<compile_context>
chip_gen: v5e
topology: v5e:2x2
jax: 0.10.0
libtpu: 0.0.40
codegen_flags: <defaults>
</compile_context>

<pallas_src>
import functools

import jax
import jax.numpy as jnp
from jax import lax
from jax.experimental import pallas as pl
from jax.experimental.pallas import tpu as pltpu


_PALLAS_MIN_BYTES = 4 * 1024 * 1024  # below this a kernel launch is not worth it


def _round_up(x: int, m: int) -> int:
    return -(-x // m) * m


def _pick_tm(M: int, D: int) -> int:
    """Row-tile size: multiple of 128, VMEM-safe on all gens, >=2 grid steps."""
    # Keep the double-buffered x tile around 12 MiB total (2 * tm * D * 4 bytes).
    cap = max(128, (6 * 1024 * 1024) // (4 * D))
    tm = min(2048, cap)
    # Keep at least 2 grid steps when there is enough work (v7x megacore).
    tm = min(tm, max(128, _round_up(_round_up(M, 2) // 2, 128)))
    if M < 128:
        # Tiny inputs: shrink the tile to the (8-aligned) row count so the
        # block never exceeds the array.
        return max(8, _round_up(M, 8))
    return max(128, (tm // 128) * 128)


def _f0_kernel(x_ref, w_ref, b_ref, o_ref):
    # x_ref: (tm, D)   w_ref: (1, D)   b_ref: (1, 1)   o_ref: (1, 1, tm)
    s = lax.dot_general(
        w_ref[...], x_ref[...],
        dimension_numbers=(((1,), (1,)), ((), ())),  # contract over D: w @ x^T
        preferred_element_type=jnp.float32,
    )  # -> (1, tm): rows of x land on lanes => lane-dense store
    o_ref[...] = ((s + b_ref[...]).astype(o_ref.dtype))[None]


@functools.partial(jax.jit, static_argnames=("tm", "small_fallback"))
def f0_network_forward(x, weight, bias, *, tm=None, small_fallback=True):
    """F0Network.forward: x (B, T, D) f32, weight (1, D), bias (1,) -> (B, T)."""
    B, T, D = x.shape
    M = B * T

    if small_fallback and M * D * x.dtype.itemsize < _PALLAS_MIN_BYTES:
        # Whole problem fits in a few vregs; plain XLA beats launch + DMA setup.
        return (x @ weight.T + bias)[..., 0]

    tm = _pick_tm(M, D) if tm is None else tm
    grid = pl.cdiv(M, tm)

    x2d = x.reshape(M, D)                          # leading-dim merge: free
    w = weight.reshape(1, D).astype(jnp.float32)
    b = bias.reshape(1, 1).astype(jnp.float32)

    cost = pl.CostEstimate(
        flops=2 * M * D,
        transcendentals=0,
        bytes_accessed=4 * M * D + 4 * M + 4 * D,
    )

    out = pl.pallas_call(
        _f0_kernel,
        out_shape=jax.ShapeDtypeStruct((grid, 1, tm), jnp.float32),
        grid_spec=pltpu.PrefetchScalarGridSpec(
            num_scalar_prefetch=0,
            grid=(grid,),
            in_specs=[
                pl.BlockSpec((tm, D), lambda i: (i, 0)),  # streamed x row tile
                pl.BlockSpec((1, D), lambda i: (0, 0)),   # resident weight row
                pl.BlockSpec((1, 1), lambda i: (0, 0)),   # resident bias
            ],
            out_specs=pl.BlockSpec((1, 1, tm), lambda i: (i, 0, 0)),
        ),
        compiler_params=pltpu.CompilerParams(
            dimension_semantics=("parallel",),
            vmem_limit_bytes=32 * 1024 * 1024,
        ),
        cost_estimate=cost,
    )(x2d, w, b)

    # (grid, 1, tm) -> (grid*tm,), drop padded tail rows, -> (B, T)  (== squeeze(2))
    return out.reshape(grid * tm)[:M].reshape(B, T)


if __name__ == "__main__":
    key = jax.random.PRNGKey(0)
    kx, kw, kb = jax.random.split(key, 3)

    B, T, D = 2, 8, 32  # small demo shapes: batch=2, seq=8, input_size=32

    x = jax.random.normal(kx, (B, T, D), dtype=jnp.float32)
    # Synthetic nn.Linear(input_size, 1) parameters.
    bound = 1.0 / jnp.sqrt(D)
    weight = jax.random.uniform(kw, (1, D), jnp.float32, -bound, bound)
    bias = jax.random.uniform(kb, (1,), jnp.float32, -bound, bound)

    # Force the Pallas path (the wrapper would otherwise skip the kernel for
    # such a tiny input).
    y = f0_network_forward(x, weight, bias, small_fallback=False)
    jax.block_until_ready(y)

    # Plain-JAX reference of the PyTorch forward.
    ref = (x @ weight.T + bias)[..., 0]
    assert y.shape == (B, T)
    assert jnp.allclose(y, ref, atol=1e-4, rtol=1e-4), float(jnp.max(jnp.abs(y - ref)))

    print("KERNEL_OK")
</pallas_src>

<mosaic_0001>
module attributes {stable_mosaic.version = 11 : i64} {
  func.func @_f0_kernel(%arg0: i32, %arg1: memref<16x32xf32, #tpu.memory_space<vmem>>, %arg2: memref<1x32xf32, #tpu.memory_space<vmem>>, %arg3: memref<1x1xf32, #tpu.memory_space<vmem>>, %arg4: memref<1x1x16xf32, #tpu.memory_space<vmem>>) attributes {dimension_semantics = [#tpu.dimension_semantics<parallel>], iteration_bounds = array<i64: 1>, scalar_prefetch = 0 : i64, scratch_operands = 0 : i64, tpu.core_type = #tpu.core_type<tc>, window_params = [{transform_indices = @transform_0, window_bounds = array<i64: 16, 32>}, {pipeline_mode = #tpu.pipeline_mode<synchronous>, transform_indices = @transform_1, window_bounds = array<i64: 1, 32>}, {pipeline_mode = #tpu.pipeline_mode<synchronous>, transform_indices = @transform_2, window_bounds = array<i64: 1, 1>}, {transform_indices = @transform_3, window_bounds = array<i64: 1, 1, 16>}]} {
    %c0 = arith.constant 0 : index
    %c0_0 = arith.constant 0 : index
    %0 = vector.load %arg2[%c0, %c0_0] : memref<1x32xf32, #tpu.memory_space<vmem>>, vector<1x32xf32>
    %c0_1 = arith.constant 0 : index
    %c0_2 = arith.constant 0 : index
    %1 = vector.load %arg1[%c0_1, %c0_2] : memref<16x32xf32, #tpu.memory_space<vmem>>, vector<16x32xf32>
    %cst = arith.constant dense<0.000000e+00> : vector<1x16xf32>
    %2 = tpu.matmul %0, %1, %cst {dimension_numbers = #tpu.dot_dimension_numbers<[1], [1], [0], [0], [0, 0, 1, 0], [], []>} : vector<1x32xf32>, vector<16x32xf32>, vector<1x16xf32> -> vector<1x16xf32>
    %c0_3 = arith.constant 0 : index
    %c0_4 = arith.constant 0 : index
    %3 = vector.load %arg3[%c0_3, %c0_4] : memref<1x1xf32, #tpu.memory_space<vmem>>, vector<1x1xf32>
    %4 = vector.broadcast %3 : vector<1x1xf32> to vector<1x16xf32>
    %5 = arith.addf %2, %4 : vector<1x16xf32>
    %6 = vector.shape_cast %5 : vector<1x16xf32> to vector<1x1x16xf32>
    %c0_5 = arith.constant 0 : index
    %c0_6 = arith.constant 0 : index
    %c0_7 = arith.constant 0 : index
    %7 = vector.load %arg4[%c0_5, %c0_6, %c0_7] : memref<1x1x16xf32, #tpu.memory_space<vmem>>, vector<1x1x16xf32>
    tpu.vector_store %arg4[%c0_5, %c0_6, %c0_7], %6 {strides = array<i32>} : memref<1x1x16xf32, #tpu.memory_space<vmem>>, vector<1x1x16xf32>,
    return
  }
  func.func @transform_0(%arg0: i32) -> (i32, i32) {
    %c0_i32 = arith.constant 0 : i32
    %c0_i32_0 = arith.constant 0 : i32
    return %arg0, %c0_i32 : i32, i32
  }
  func.func @transform_1(%arg0: i32) -> (i32, i32) {
    %c0_i32 = arith.constant 0 : i32
    %c0_i32_0 = arith.constant 0 : i32
    %c0_i32_1 = arith.constant 0 : i32
    return %c0_i32, %c0_i32_0 : i32, i32
  }
  func.func @transform_2(%arg0: i32) -> (i32, i32) {
    %c0_i32 = arith.constant 0 : i32
    %c0_i32_0 = arith.constant 0 : i32
    %c0_i32_1 = arith.constant 0 : i32
    return %c0_i32, %c0_i32_0 : i32, i32
  }
  func.func @transform_3(%arg0: i32) -> (i32, i32, i32) {
    %c0_i32 = arith.constant 0 : i32
    %c0_i32_0 = arith.constant 0 : i32
    %c0_i32_1 = arith.constant 0 : i32
    return %arg0, %c0_i32, %c0_i32_0 : i32, i32, i32
  }
}

</mosaic_0001>

<llo_original>
// kernel: f0_network_forward.1
$region0: #{f0_network_forward.1}
  #allocation0 [shape = 'u32[]', space=smem, size = 0x4, offset = 0x4, fixed_abs, tag = 'smem constant byte address 0x4 - core index']
  #allocation1 [shape = 'u32[72,128]{1,0:T(1,128)}', space=vmem, size = 0x9000, scoped, tag = 'internal scratch']
  #allocation2 [shape = 'f32[1,1]{1,0:T(1,128)S(1)}', space=vmem, size = 0x200, scoped, tag = 'scoped memory for f0_network_forward.1']
  %s0 = inlined_call_operand.hbm [shape: f32[16,32], index: 0, kind: input, shape index: {}]
  %s1 = inlined_call_operand.vmem [shape: f32[1,32], index: 1, kind: input, shape index: {}]
  %s2 = inlined_call_operand.<no memory space> [shape: f32[1,1], index: 2, kind: input, shape index: {}]
  %s3 = inlined_call_operand.vmem [shape: f32[1,1,16], index: 3, kind: output, shape index: {}]
  %s4 = sld [smem:[#allocation0]]
  $region26: #{f0_network_forward.1} parent=0
    _
  %s6 = ssub.s32 1, %s4
  %s7 = scalar_select 0, %s6, %s4
  %v8 = vstv %s2
  %9 = vst [vmem:[#allocation2] sm:$0x1] %v8
  $region1: #{f0_network_forward.1} parent=0
    #allocation3 [shape = 'u8[8192]{0}', space=vmem, size = 0x2000, scoped, tag = 'input window, operand 0, single buffered']
    #allocation4 [shape = 's32[1]{0}', space=sflag, size = 0x4, scoped, tag = 'scoped memory for f0_network_forward.1']
    %10 = vsyncpa [#allocation4], 0
    // Predicated region
    $region2: #{f0_network_forward.1} parent=1 // pred_check
      _
    $region3: #{f0_network_forward.1} parent=1 // pred_check_branch
      %12 = sbr.rel (0) target = $region5
    $region4: #{f0_network_forward.1} parent=1 // pred_region
      %14 = vsyncadd [#allocation4], 0
      %s15 = sshll.u32 %s0, 4
      %s16 = int_to_ptr.hbm [resolvable:$true] %s15
      %s17 = sshll.u32 [#allocation3], 4
      %s18 = int_to_ptr.vmem [resolvable:$true] %s17
      %23 = dma.hbm_to_vmem [thread:$0]  %s16, 256, %s18, [#allocation4], 128, 128, 8
    $region5: #{f0_network_forward.1} parent=1 // pred_fallthru
      _
    // Predicated region
    $region6: #{f0_network_forward.1} parent=1 // pred_check
      _
    $region7: #{f0_network_forward.1} parent=1 // pred_check_branch
      %25 = sbr.rel (0) target = $region9
    $region8: #{f0_network_forward.1} parent=1 // pred_region
      _
    $region9: #{f0_network_forward.1} parent=1 // pred_fallthru
      _
    // Predicated region
    $region10: #{f0_network_forward.1} parent=1 // pred_check
      _
    $region11: #{f0_network_forward.1} parent=1 // pred_check_branch
      %27 = sbr.rel (0) target = $region13
    $region12: #{f0_network_forward.1} parent=1 // pred_region
      _
    $region13: #{f0_network_forward.1} parent=1 // pred_fallthru
      _
    // Predicated region
    $region14: #{f0_network_forward.1} parent=1 // pred_check
      _
    $region15: #{f0_network_forward.1} parent=1 // pred_check_branch
      %29 = sbr.rel (0) target = $region17
    $region16: #{f0_network_forward.1} parent=1 // pred_region
      %31 = dma.done [#allocation4], 256
    $region17: #{f0_network_forward.1} parent=1 // pred_fallthru
      _
    %v32 = vld [vmem:[%s1] sm:$0x1]
    %v33 = vld [vmem:[#allocation3] sm:$0xff]
    %v34 = vld [vmem:[#allocation3 + $0x8] sm:$0xff]
    %v35 = vld [vmem:[#allocation2] sm:$0x1]
    %37 = vset.pattern.permute.xlu0 0
    %38 = vperm.xlu0 %37, %v35
    %v39 = vpop.permute.xlu0 %38
    %v41 = vperm.slane %v39, 0
    %vm42 = vcmask 261120
    %v44 = vsel %vm42, %v32, 0
    %v47 = vsel %vm42, %v33, 0
    %v50 = vsel %vm42, %v34, 0
    %52 = vmatpush.xpose.msra.mxu0 0.0
    %53 = vmatpush.xpose.msra.mxu0 0.0
    %54 = vmatpush.xpose.msra.mxu0 0.0
    %55 = vmatpush.xpose.msra.mxu0 0.0
    %56 = vmatpush.xpose.msra.mxu0 0.0
    %57 = vmatpush.xpose.msra.mxu0 0.0
    %58 = vmatpush.xpose.msra.mxu0 0.0
    %59 = vmatpush.xpose.msra.mxu0 0.0
    %60 = vmatpush.xpose.msra.mxu0 0.0
    %61 = vmatpush.xpose.msra.mxu0 0.0
    %62 = vmatpush.xpose.msra.mxu0 0.0
    %63 = vmatpush.xpose.msra.mxu0 0.0
    %64 = vmatpush.xpose.msra.mxu0 0.0
    %65 = vmatpush.xpose.msra.mxu0 0.0
    %66 = vmatpush.xpose.msra.mxu0 %v50
    %67 = vmatpush.xpose.msra.mxu0 %v47
    %68 = vmatmul.f32.gmra.mxu0 %v44
    %v69 = vpop.f32.mrf.mxu0
    %v70 = vadd.f32 %v41, %v69
    %71 = vdwg.mxu0
    %vm72 = vcmask 122880
    %73 = vst.msk [vmem:[%s3] sm:$0x1] %vm72, %v70
    // Predicated region
    $region18: #{f0_network_forward.1} parent=1 // pred_check
      _
    $region19: #{f0_network_forward.1} parent=1 // pred_check_branch
      %75 = sbr.rel (0) target = $region21
    $region20: #{f0_network_forward.1} parent=1 // pred_region
      _
    $region21: #{f0_network_forward.1} parent=1 // pred_fallthru
      _
    // Predicated region
    $region22: #{f0_network_forward.1} parent=1 // pred_check
      _
    $region23: #{f0_network_forward.1} parent=1 // pred_check_branch
      %77 = sbr.rel (0) target = $region25
    $region24: #{f0_network_forward.1} parent=1 // pred_region
      _
    $region25: #{f0_network_forward.1} parent=1 // pred_fallthru
      _
    %78 = vsyncpa [#allocation4], 1

</llo_original>
